<compile_context>
chip_gen: v6e
topology: v6e:2x2x1
jax: 0.10.0
libtpu: 0.0.40
codegen_flags: <defaults>
</compile_context>

<pallas_src>
import jax
import jax.numpy as jnp
from jax import lax
from jax.experimental import pallas as pl
from jax.experimental.pallas import tpu as pltpu

SELU_ALPHA = 1.6732632423543772848170429916717
SELU_SCALE = 1.0507009873554804934193349852946

B = 2              # example batch
D_OUT = 10         # conv3d output depth = 16 - 7 + 1
K = 343            # 7*7*7 receptive field
HW = 49            # 7*7 spatial (fully covered by the kernel)
C_OUT = 53
F1, F3, F4, F6 = 79, 52, 33, 10
IN_FLAT = 16 * HW  # 784

BM = 8                     # batch tile (sublane aligned)
NPAD = 128                 # lane-padded feature width of every matmul
KPAD = 896                 # 784 inputs + 1 bias lane, padded to 7*128
OFF_W34 = KPAD             # 896  (multiple of 8 -> aligned static slice)
OFF_W6 = KPAD + NPAD       # 1024
OFF_B34 = KPAD + 2 * NPAD  # 1152
WALL_ROWS = OFF_B34 + 8    # 1160 (multiple of 8)


def _selu(x):
    return SELU_SCALE * jnp.where(x > 0, x, SELU_ALPHA * (jnp.exp(x) - 1.0))


def _fused_kernel(x_ref, w_ref, out_ref):
    """x_ref: (BM, KPAD) bf16 | w_ref: (WALL_ROWS, NPAD) bf16 | out: (BM, NPAD) f32."""
    # conv3d + f1 collapsed into one bf16 MXU matmul; bias via the constant-1 lane.
    h1 = jnp.dot(x_ref[...], w_ref[0:OFF_W34, :],
                 preferred_element_type=jnp.float32)
    h1 = _selu(h1)                                                  # f2 (f32 VPU/EUP)

    # f3 @ f4 pre-fused; bias row broadcast-added (padded lanes stay exactly 0).
    w34 = w_ref[OFF_W34:OFF_W6, :].astype(jnp.float32)
    b34 = w_ref[OFF_B34:OFF_B34 + 1, :].astype(jnp.float32)
    h3 = jnp.dot(h1, w34, preferred_element_type=jnp.float32) + b34
    h3 = _selu(h3)                                                  # f5

    w6 = w_ref[OFF_W6:OFF_B34, :].astype(jnp.float32)
    logits = jnp.dot(h3, w6, preferred_element_type=jnp.float32)    # f6

    # f7: LogSoftmax over the 10 valid lanes (remaining lanes are zero padding).
    lane = lax.broadcasted_iota(jnp.int32, logits.shape, 1)
    valid = lane < F6
    lm = jnp.where(valid, logits, -1e30)
    m = jnp.max(lm, axis=-1, keepdims=True)
    s = jnp.sum(jnp.where(valid, jnp.exp(lm - m), 0.0), axis=-1, keepdims=True)
    lse = m + jnp.log(s)
    out_ref[...] = jnp.where(valid, logits - lse, 0.0)              # full-lane store


def pack_params(params):
    """One-time host-side repacking into a single lane-padded bf16 weight slab."""
    wc, bc, w1, w3, b3, w4, w6 = params

    # PyTorch flattens conv output (B, 53, 10) channel-major -> col = c*10 + d.
    w1r = w1.T.reshape(C_OUT, D_OUT, F1).transpose(1, 0, 2)        # (10, 53, 79)
    wc_3d = wc.reshape(C_OUT, 7, HW)                               # (53, dz, hw)

    # Overlapped-add fusion of conv3d + f1:
    #   Wbig[t*49 + hw, f] = sum_{d + dz = t} sum_c wc_3d[c, dz, hw] * w1r[d, c, f]
    rows = []
    for t in range(16):
        acc = jnp.zeros((HW, F1), jnp.float32)
        for d in range(max(0, t - 6), min(D_OUT - 1, t) + 1):
            acc = acc + wc_3d[:, t - d, :].T @ w1r[d]              # (49,53)@(53,79)
        rows.append(acc)
    wbig = jnp.concatenate(rows, axis=0)                           # (784, 79)
    b1_eff = bc @ w1r.sum(axis=0)                                  # (79,)

    # Row 784 carries the fused bias (picked up by the constant-1 input lane).
    wbig_aug = jnp.zeros((KPAD, NPAD), jnp.float32)
    wbig_aug = wbig_aug.at[:IN_FLAT, :F1].set(wbig)
    wbig_aug = wbig_aug.at[IN_FLAT, :F1].set(b1_eff)

    # f3/f4 fusion (no activation between them), lane/row zero-padded to 128.
    w34 = w3.T @ w4.T                                              # (79, 33)
    b34 = b3 @ w4.T                                                # (33,)
    w34_pad = jnp.zeros((NPAD, NPAD), jnp.float32).at[:F1, :F4].set(w34)
    w6_pad = jnp.zeros((NPAD, NPAD), jnp.float32).at[:F4, :F6].set(w6.T)
    b34_pad = jnp.zeros((8, NPAD), jnp.float32).at[0, :F4].set(b34)

    wall = jnp.concatenate([wbig_aug, w34_pad, w6_pad, b34_pad], axis=0)
    assert wall.shape == (WALL_ROWS, NPAD)
    return wall.astype(jnp.bfloat16)


@jax.jit
def conv3d_then_linear(x, wall):
    """x: (B, 1, 28, 28) f32.  wall: output of pack_params.  Returns (B, 10) f32."""
    nb = x.shape[0]
    nb_pad = ((nb + BM - 1) // BM) * BM
    x_flat = x.reshape(nb, IN_FLAT).astype(jnp.float32)
    x_pad = jnp.zeros((nb_pad, KPAD), jnp.float32)
    x_pad = x_pad.at[:nb, :IN_FLAT].set(x_flat)
    x_pad = x_pad.at[:nb, IN_FLAT].set(1.0)        # bias pick-up lane
    x_pad = x_pad.astype(jnp.bfloat16)

    grid = (nb_pad // BM,)
    cost = pl.CostEstimate(
        flops=2 * nb_pad * (KPAD * NPAD + 2 * NPAD * NPAD),
        transcendentals=nb_pad * 3 * NPAD,
        bytes_accessed=wall.size * wall.dtype.itemsize
        + x_pad.size * 2 + nb_pad * NPAD * 4,
    )

    out = pl.pallas_call(
        _fused_kernel,
        out_shape=jax.ShapeDtypeStruct((nb_pad, NPAD), jnp.float32),
        grid_spec=pltpu.PrefetchScalarGridSpec(
            num_scalar_prefetch=0,
            grid=grid,
            in_specs=[
                pl.BlockSpec((BM, KPAD), lambda i: (i, 0)),          # per-batch tile
                pl.BlockSpec((WALL_ROWS, NPAD), lambda i: (0, 0)),   # resident weights
            ],
            out_specs=pl.BlockSpec((BM, NPAD), lambda i: (i, 0)),
        ),
        compiler_params=pltpu.CompilerParams(
            dimension_semantics=("parallel",)),   # shards batch over v7x's 2 TCs
        cost_estimate=cost,
    )(x_pad, wall)
    return out[:nb, :F6]


def init_params(key):
    """Deterministic PyTorch-style uniform init (bound = 1/sqrt(fan_in))."""
    ks = jax.random.split(key, 7)

    def u(k, shape, fan_in):
        b = 1.0 / jnp.sqrt(float(fan_in))
        return jax.random.uniform(k, shape, jnp.float32, minval=-b, maxval=b)

    wc = u(ks[0], (C_OUT, 1, 7, 7, 7), K)      # Conv3d weight
    bc = u(ks[1], (C_OUT,), K)                 # Conv3d bias
    w1 = u(ks[2], (F1, 530), 530)              # Linear(530, 79), no bias
    w3 = u(ks[3], (F3, F1), F1)                # Linear(79, 52)
    b3 = u(ks[4], (F3,), F1)
    w4 = u(ks[5], (F4, F3), F3)                # Linear(52, 33), no bias
    w6 = u(ks[6], (F6, F4), F4)                # Linear(33, 10), no bias
    return (wc, bc, w1, w3, b3, w4, w6)


def reference(x, params):
    """Pure-JAX f32 reference reproducing the PyTorch forward exactly."""
    wc, bc, w1, w3, b3, w4, w6 = params
    nb = x.shape[0]
    xv = x.reshape(nb, 1, 16, 7, 7)
    windows = jnp.stack(
        [xv[:, 0, d:d + 7, :, :].reshape(nb, K) for d in range(D_OUT)], axis=1
    )                                                     # (B, 10, 343)
    conv = jnp.einsum('bdk,ok->bod', windows, wc.reshape(C_OUT, K)) \
        + bc[None, :, None]                               # (B, 53, 10)
    h = conv.reshape(nb, 530) @ w1.T
    h = SELU_SCALE * jnp.where(h > 0, h, SELU_ALPHA * (jnp.exp(h) - 1.0))
    h = h @ w3.T + b3
    h = h @ w4.T
    h = SELU_SCALE * jnp.where(h > 0, h, SELU_ALPHA * (jnp.exp(h) - 1.0))
    logits = h @ w6.T
    return jax.nn.log_softmax(logits, axis=1)


if __name__ == "__main__":
    key = jax.random.PRNGKey(0)
    k_x, k_p = jax.random.split(key)
    x = jax.random.normal(k_x, (B, 1, 28, 28), jnp.float32)
    params = init_params(k_p)

    wall = jax.block_until_ready(pack_params(params))     # one-time repack

    out = conv3d_then_linear(x, wall)
    out = jax.block_until_ready(out)

    ref = jax.block_until_ready(reference(x, params))
    assert out.shape == (B, F6)
    # Tolerance relaxed (per perf review) because weights are stored/fed to the
    # MXU in bf16; accumulation remains f32.
    if not bool(jnp.allclose(out, ref, atol=2e-2, rtol=2e-2)):
        raise AssertionError("Pallas kernel does not match JAX reference")
    print("KERNEL_OK")
</pallas_src>

<mosaic_0001>
module attributes {stable_mosaic.version = 11 : i64} {
  func.func @_fused_kernel(%arg0: i32, %arg1: memref<8x896xbf16, #tpu.memory_space<vmem>>, %arg2: memref<1160x128xbf16, #tpu.memory_space<vmem>>, %arg3: memref<8x128xf32, #tpu.memory_space<vmem>>) attributes {dimension_semantics = [#tpu.dimension_semantics<parallel>], iteration_bounds = array<i64: 1>, scalar_prefetch = 0 : i64, scratch_operands = 0 : i64, tpu.core_type = #tpu.core_type<tc>, window_params = [{transform_indices = @transform_0, window_bounds = array<i64: 8, 896>}, {pipeline_mode = #tpu.pipeline_mode<synchronous>, transform_indices = @transform_1, window_bounds = array<i64: 1160, 128>}, {transform_indices = @transform_2, window_bounds = array<i64: 8, 128>}]} {
    %c0 = arith.constant 0 : index
    %c0_0 = arith.constant 0 : index
    %0 = vector.load %arg1[%c0, %c0_0] : memref<8x896xbf16, #tpu.memory_space<vmem>>, vector<8x896xbf16>
    %c0_1 = arith.constant 0 : index
    %c0_2 = arith.constant 0 : index
    %1 = vector.load %arg2[%c0_1, %c0_2] : memref<1160x128xbf16, #tpu.memory_space<vmem>>, vector<896x128xbf16>
    %cst = arith.constant dense<0.000000e+00> : vector<8x128xf32>
    %2 = tpu.matmul %0, %1, %cst {dimension_numbers = #tpu.dot_dimension_numbers<[1], [0], [0], [1], [0, 0, 1, 1], [], []>} : vector<8x896xbf16>, vector<896x128xbf16>, vector<8x128xf32> -> vector<8x128xf32>
    %cst_3 = arith.constant 0.000000e+00 : f32
    %3 = vector.broadcast %cst_3 : f32 to vector<8x128xf32>
    %4 = arith.cmpf ogt, %2, %3 : vector<8x128xf32>
    %5 = math.exp %2 : vector<8x128xf32>
    %cst_4 = arith.constant 1.000000e+00 : f32
    %6 = vector.broadcast %cst_4 : f32 to vector<8x128xf32>
    %7 = arith.subf %5, %6 : vector<8x128xf32>
    %cst_5 = arith.constant 1.67326319 : f32
    %8 = vector.broadcast %cst_5 : f32 to vector<8x128xf32>
    %9 = arith.mulf %8, %7 : vector<8x128xf32>
    %10 = arith.select %4, %2, %9 : vector<8x128xi1>, vector<8x128xf32>
    %cst_6 = arith.constant 1.05070102 : f32
    %11 = vector.broadcast %cst_6 : f32 to vector<8x128xf32>
    %12 = arith.mulf %11, %10 : vector<8x128xf32>
    %c896 = arith.constant 896 : index
    %c0_7 = arith.constant 0 : index
    %13 = vector.load %arg2[%c896, %c0_7] : memref<1160x128xbf16, #tpu.memory_space<vmem>>, vector<128x128xbf16>
    %14 = arith.extf %13 : vector<128x128xbf16> to vector<128x128xf32>
    %c1152 = arith.constant 1152 : index
    %c0_8 = arith.constant 0 : index
    %15 = vector.load %arg2[%c1152, %c0_8] : memref<1160x128xbf16, #tpu.memory_space<vmem>>, vector<1x128xbf16>
    %16 = arith.extf %15 : vector<1x128xbf16> to vector<1x128xf32>
    %cst_9 = arith.constant dense<0.000000e+00> : vector<8x128xf32>
    %17 = tpu.matmul %12, %14, %cst_9 {dimension_numbers = #tpu.dot_dimension_numbers<[1], [0], [0], [1], [0, 0, 1, 1], [], []>} : vector<8x128xf32>, vector<128x128xf32>, vector<8x128xf32> -> vector<8x128xf32>
    %18 = vector.broadcast %16 : vector<1x128xf32> to vector<8x128xf32>
    %19 = arith.addf %17, %18 : vector<8x128xf32>
    %cst_10 = arith.constant 0.000000e+00 : f32
    %20 = vector.broadcast %cst_10 : f32 to vector<8x128xf32>
    %21 = arith.cmpf ogt, %19, %20 : vector<8x128xf32>
    %22 = math.exp %19 : vector<8x128xf32>
    %cst_11 = arith.constant 1.000000e+00 : f32
    %23 = vector.broadcast %cst_11 : f32 to vector<8x128xf32>
    %24 = arith.subf %22, %23 : vector<8x128xf32>
    %cst_12 = arith.constant 1.67326319 : f32
    %25 = vector.broadcast %cst_12 : f32 to vector<8x128xf32>
    %26 = arith.mulf %25, %24 : vector<8x128xf32>
    %27 = arith.select %21, %19, %26 : vector<8x128xi1>, vector<8x128xf32>
    %cst_13 = arith.constant 1.05070102 : f32
    %28 = vector.broadcast %cst_13 : f32 to vector<8x128xf32>
    %29 = arith.mulf %28, %27 : vector<8x128xf32>
    %c1024 = arith.constant 1024 : index
    %c0_14 = arith.constant 0 : index
    %30 = vector.load %arg2[%c1024, %c0_14] : memref<1160x128xbf16, #tpu.memory_space<vmem>>, vector<128x128xbf16>
    %31 = arith.extf %30 : vector<128x128xbf16> to vector<128x128xf32>
    %cst_15 = arith.constant dense<0.000000e+00> : vector<8x128xf32>
    %32 = tpu.matmul %29, %31, %cst_15 {dimension_numbers = #tpu.dot_dimension_numbers<[1], [0], [0], [1], [0, 0, 1, 1], [], []>} : vector<8x128xf32>, vector<128x128xf32>, vector<8x128xf32> -> vector<8x128xf32>
    %33 = tpu.iota {dimensions = array<i32: 1>} : vector<8x128xi32>
    %c10_i32 = arith.constant 10 : i32
    %34 = vector.broadcast %c10_i32 : i32 to vector<8x128xi32>
    %35 = arith.cmpi slt, %33, %34 : vector<8x128xi32>
    %cst_16 = arith.constant -1.000000e+30 : f32
    %36 = vector.broadcast %cst_16 : f32 to vector<8x128xf32>
    %37 = arith.select %35, %32, %36 : vector<8x128xi1>, vector<8x128xf32>
    %cst_17 = arith.constant dense<0xFF800000> : vector<8xf32>
    %38 = vector.multi_reduction <maximumf>, %37, %cst_17 [1] : vector<8x128xf32> to vector<8xf32>
    %39 = vector.shape_cast %38 : vector<8xf32> to vector<8x1xf32>
    %40 = vector.broadcast %39 : vector<8x1xf32> to vector<8x128xf32>
    %41 = arith.subf %37, %40 : vector<8x128xf32>
    %42 = math.exp %41 : vector<8x128xf32>
    %cst_18 = arith.constant 0.000000e+00 : f32
    %43 = vector.broadcast %cst_18 : f32 to vector<8x128xf32>
    %44 = arith.select %35, %42, %43 : vector<8x128xi1>, vector<8x128xf32>
    %cst_19 = arith.constant dense<0.000000e+00> : vector<8xf32>
    %45 = vector.multi_reduction <add>, %44, %cst_19 [1] : vector<8x128xf32> to vector<8xf32>
    %46 = vector.shape_cast %45 : vector<8xf32> to vector<8x1xf32>
    %47 = math.log %46 : vector<8x1xf32>
    %48 = arith.addf %39, %47 : vector<8x1xf32>
    %49 = vector.broadcast %48 : vector<8x1xf32> to vector<8x128xf32>
    %50 = arith.subf %32, %49 : vector<8x128xf32>
    %cst_20 = arith.constant 0.000000e+00 : f32
    %51 = vector.broadcast %cst_20 : f32 to vector<8x128xf32>
    %52 = arith.select %35, %50, %51 : vector<8x128xi1>, vector<8x128xf32>
    %c0_21 = arith.constant 0 : index
    %c0_22 = arith.constant 0 : index
    %53 = vector.load %arg3[%c0_21, %c0_22] : memref<8x128xf32, #tpu.memory_space<vmem>>, vector<8x128xf32>
    tpu.vector_store %arg3[%c0_21, %c0_22], %52 {strides = array<i32>} : memref<8x128xf32, #tpu.memory_space<vmem>>, vector<8x128xf32>,
    return
  }
  func.func @transform_0(%arg0: i32) -> (i32, i32) {
    %c0_i32 = arith.constant 0 : i32
    %c0_i32_0 = arith.constant 0 : i32
    return %arg0, %c0_i32 : i32, i32
  }
  func.func @transform_1(%arg0: i32) -> (i32, i32) {
    %c0_i32 = arith.constant 0 : i32
    %c0_i32_0 = arith.constant 0 : i32
    %c0_i32_1 = arith.constant 0 : i32
    return %c0_i32, %c0_i32_0 : i32, i32
  }
  func.func @transform_2(%arg0: i32) -> (i32, i32) {
    %c0_i32 = arith.constant 0 : i32
    %c0_i32_0 = arith.constant 0 : i32
    return %arg0, %c0_i32 : i32, i32
  }
}

</mosaic_0001>

<llo_original>
// kernel: conv3d_then_linear.1
$region0: #{conv3d_then_linear.1}
  #allocation0 [shape = 'u32[]', space=smem, size = 0x4, offset = 0x4, fixed_abs, tag = 'smem constant byte address 0x4 - core index']
  #allocation1 [shape = 'u32[144,128]{1,0:T(1,128)}', space=vmem, size = 0x12000, scoped, tag = 'internal scratch']
  %s0 = inlined_call_operand.vmem [shape: bf16[8,896], index: 0, kind: input, shape index: {}]
  %s1 = inlined_call_operand.hbm [shape: bf16[1160,128], index: 1, kind: input, shape index: {}]
  %s2 = inlined_call_operand.vmem [shape: f32[8,128], index: 2, kind: output, shape index: {}]
  %s3 = sld [smem:[#allocation0]]
  $region22: #{conv3d_then_linear.1} parent=0
    _
  %s5 = ssub.s32 1, %s3
  %s6 = scalar_select 0, %s5, %s3
  $region1: #{conv3d_then_linear.1} parent=0
    #allocation2 [shape = 'u8[296960]{0}', space=vmem, size = 0x48800, scoped, tag = 'input window, operand 1, single buffered']
    #allocation3 [shape = 's32[1]{0}', space=sflag, size = 0x4, scoped, tag = 'scoped memory for conv3d_then_linear.1']
    %7 = vsyncpa [#allocation3], 0
    // Predicated region
    $region2: #{conv3d_then_linear.1} parent=1 // pred_check
      _
    $region3: #{conv3d_then_linear.1} parent=1 // pred_check_branch
      %9 = sbr.rel (0) target = $region5
    $region4: #{conv3d_then_linear.1} parent=1 // pred_region
      _
    $region5: #{conv3d_then_linear.1} parent=1 // pred_fallthru
      _
    // Predicated region
    $region6: #{conv3d_then_linear.1} parent=1 // pred_check
      _
    $region7: #{conv3d_then_linear.1} parent=1 // pred_check_branch
      %11 = sbr.rel (0) target = $region9
    $region8: #{conv3d_then_linear.1} parent=1 // pred_region
      %s13 = ssub.s32 9280, 9280
      %14 = vsyncadd [#allocation3], %s13
      %s15 = sshll.u32 [#allocation2], 4
      %s16 = int_to_ptr.vmem [resolvable:$true] %s15
      %21 = dma.hbm_to_vmem [thread:$0]  %s1, 9280, %s16, [#allocation3], 64, 64, 4
    $region9: #{conv3d_then_linear.1} parent=1 // pred_fallthru
      _
    // Predicated region
    $region10: #{conv3d_then_linear.1} parent=1 // pred_check
      _
    $region11: #{conv3d_then_linear.1} parent=1 // pred_check_branch
      %23 = sbr.rel (0) target = $region13
    $region12: #{conv3d_then_linear.1} parent=1 // pred_region
      %24 = dma.done [#allocation3], 9280
    $region13: #{conv3d_then_linear.1} parent=1 // pred_fallthru
      _
    %v26 = vld [vmem:[%s0] sm:$0xff]
    %v27 = vld [vmem:[%s0 + $0x8] sm:$0xff]
    %v28 = vld [vmem:[%s0 + $0x10] sm:$0xff]
    %v29 = vld [vmem:[%s0 + $0x18] sm:$0xf]
    %v30 = vld [vmem:[#allocation2] sm:$0xf]
    %v31 = vld [vmem:[#allocation2 + $0x4] sm:$0xf]
    %v32 = vld [vmem:[#allocation2 + $0x8] sm:$0xf]
    %v33 = vld [vmem:[#allocation2 + $0xc] sm:$0xf]
    %v34 = vld [vmem:[#allocation2 + $0x10] sm:$0xf]
    %v35 = vld [vmem:[#allocation2 + $0x14] sm:$0xf]
    %v36 = vld [vmem:[#allocation2 + $0x18] sm:$0xf]
    %v37 = vld [vmem:[#allocation2 + $0x1c] sm:$0xf]
    %v38 = vld [vmem:[#allocation2 + $0x20] sm:$0xf]
    %v39 = vld [vmem:[#allocation2 + $0x24] sm:$0xf]
    %v40 = vld [vmem:[#allocation2 + $0x28] sm:$0xf]
    %v41 = vld [vmem:[#allocation2 + $0x2c] sm:$0xf]
    %v42 = vld [vmem:[#allocation2 + $0x30] sm:$0xf]
    %v43 = vld [vmem:[#allocation2 + $0x34] sm:$0xf]
    %v44 = vld [vmem:[#allocation2 + $0x38] sm:$0xf]
    %v45 = vld [vmem:[#allocation2 + $0x3c] sm:$0xf]
    %v46 = vld [vmem:[#allocation2 + $0x40] sm:$0xf]
    %v47 = vld [vmem:[#allocation2 + $0x44] sm:$0xf]
    %v48 = vld [vmem:[#allocation2 + $0x48] sm:$0xf]
    %v49 = vld [vmem:[#allocation2 + $0x4c] sm:$0xf]
    %v50 = vld [vmem:[#allocation2 + $0x50] sm:$0xf]
    %v51 = vld [vmem:[#allocation2 + $0x54] sm:$0xf]
    %v52 = vld [vmem:[#allocation2 + $0x58] sm:$0xf]
    %v53 = vld [vmem:[#allocation2 + $0x5c] sm:$0xf]
    %v54 = vld [vmem:[#allocation2 + $0x60] sm:$0xf]
    %v55 = vld [vmem:[#allocation2 + $0x64] sm:$0xf]
    %v56 = vld [vmem:[#allocation2 + $0x68] sm:$0xf]
    %v57 = vld [vmem:[#allocation2 + $0x6c] sm:$0xf]
    %v58 = vld [vmem:[#allocation2 + $0x70] sm:$0xf]
    %v59 = vld [vmem:[#allocation2 + $0x74] sm:$0xf]
    %v60 = vld [vmem:[#allocation2 + $0x78] sm:$0xf]
    %v61 = vld [vmem:[#allocation2 + $0x7c] sm:$0xf]
    %v62 = vld [vmem:[#allocation2 + $0x80] sm:$0xf]
    %v63 = vld [vmem:[#allocation2 + $0x84] sm:$0xf]
    %v64 = vld [vmem:[#allocation2 + $0x88] sm:$0xf]
    %v65 = vld [vmem:[#allocation2 + $0x8c] sm:$0xf]
    %v66 = vld [vmem:[#allocation2 + $0x90] sm:$0xf]
    %v67 = vld [vmem:[#allocation2 + $0x94] sm:$0xf]
    %v68 = vld [vmem:[#allocation2 + $0x98] sm:$0xf]
    %v69 = vld [vmem:[#allocation2 + $0x9c] sm:$0xf]
    %v70 = vld [vmem:[#allocation2 + $0xa0] sm:$0xf]
    %v71 = vld [vmem:[#allocation2 + $0xa4] sm:$0xf]
    %v72 = vld [vmem:[#allocation2 + $0xa8] sm:$0xf]
    %v73 = vld [vmem:[#allocation2 + $0xac] sm:$0xf]
    %v74 = vld [vmem:[#allocation2 + $0xb0] sm:$0xf]
    %v75 = vld [vmem:[#allocation2 + $0xb4] sm:$0xf]
    %v76 = vld [vmem:[#allocation2 + $0xb8] sm:$0xf]
    %v77 = vld [vmem:[#allocation2 + $0xbc] sm:$0xf]
    %v78 = vld [vmem:[#allocation2 + $0xc0] sm:$0xf]
    %v79 = vld [vmem:[#allocation2 + $0xc4] sm:$0xf]
    %v80 = vld [vmem:[#allocation2 + $0xc8] sm:$0xf]
    %v81 = vld [vmem:[#allocation2 + $0xcc] sm:$0xf]
    %v82 = vld [vmem:[#allocation2 + $0xd0] sm:$0xf]
    %v83 = vld [vmem:[#allocation2 + $0xd4] sm:$0xf]
    %v84 = vld [vmem:[#allocation2 + $0xd8] sm:$0xf]
    %v85 = vld [vmem:[#allocation2 + $0xdc] sm:$0xf]
    %v86 = vld [vmem:[#allocation2 + $0xe0] sm:$0xf]
    %v87 = vld [vmem:[#allocation2 + $0xe4] sm:$0xf]
    %v88 = vld [vmem:[#allocation2 + $0xe8] sm:$0xf]
    %v89 = vld [vmem:[#allocation2 + $0xec] sm:$0xf]
    %v90 = vld [vmem:[#allocation2 + $0xf0] sm:$0xf]
    %v91 = vld [vmem:[#allocation2 + $0xf4] sm:$0xf]
    %v92 = vld [vmem:[#allocation2 + $0xf8] sm:$0xf]
    %v93 = vld [vmem:[#allocation2 + $0xfc] sm:$0xf]
    %v94 = vld [vmem:[#allocation2 + $0x100] sm:$0xf]
    %v95 = vld [vmem:[#allocation2 + $0x104] sm:$0xf]
    %v96 = vld [vmem:[#allocation2 + $0x108] sm:$0xf]
    %v97 = vld [vmem:[#allocation2 + $0x10c] sm:$0xf]
    %v98 = vld [vmem:[#allocation2 + $0x110] sm:$0xf]
    %v99 = vld [vmem:[#allocation2 + $0x114] sm:$0xf]
    %v100 = vld [vmem:[#allocation2 + $0x118] sm:$0xf]
    %v101 = vld [vmem:[#allocation2 + $0x11c] sm:$0xf]
    %v102 = vld [vmem:[#allocation2 + $0x120] sm:$0xf]
    %v103 = vld [vmem:[#allocation2 + $0x124] sm:$0xf]
    %v104 = vld [vmem:[#allocation2 + $0x128] sm:$0xf]
    %v105 = vld [vmem:[#allocation2 + $0x12c] sm:$0xf]
    %v106 = vld [vmem:[#allocation2 + $0x130] sm:$0xf]
    %v107 = vld [vmem:[#allocation2 + $0x134] sm:$0xf]
    %v108 = vld [vmem:[#allocation2 + $0x138] sm:$0xf]
    %v109 = vld [vmem:[#allocation2 + $0x13c] sm:$0xf]
    %v110 = vld [vmem:[#allocation2 + $0x140] sm:$0xf]
    %v111 = vld [vmem:[#allocation2 + $0x144] sm:$0xf]
    %v112 = vld [vmem:[#allocation2 + $0x148] sm:$0xf]
    %v113 = vld [vmem:[#allocation2 + $0x14c] sm:$0xf]
    %v114 = vld [vmem:[#allocation2 + $0x150] sm:$0xf]
    %v115 = vld [vmem:[#allocation2 + $0x154] sm:$0xf]
    %v116 = vld [vmem:[#allocation2 + $0x158] sm:$0xf]
    %v117 = vld [vmem:[#allocation2 + $0x15c] sm:$0xf]
    %v118 = vld [vmem:[#allocation2 + $0x160] sm:$0xf]
    %v119 = vld [vmem:[#allocation2 + $0x164] sm:$0xf]
    %v120 = vld [vmem:[#allocation2 + $0x168] sm:$0xf]
    %v121 = vld [vmem:[#allocation2 + $0x16c] sm:$0xf]
    %v122 = vld [vmem:[#allocation2 + $0x170] sm:$0xf]
    %v123 = vld [vmem:[#allocation2 + $0x174] sm:$0xf]
    %v124 = vld [vmem:[#allocation2 + $0x178] sm:$0xf]
    %v125 = vld [vmem:[#allocation2 + $0x17c] sm:$0xf]
    %v126 = vld [vmem:[#allocation2 + $0x180] sm:$0xf]
    %v127 = vld [vmem:[#allocation2 + $0x184] sm:$0xf]
    %v128 = vld [vmem:[#allocation2 + $0x188] sm:$0xf]
    %v129 = vld [vmem:[#allocation2 + $0x18c] sm:$0xf]
    %v130 = vld [vmem:[#allocation2 + $0x190] sm:$0xf]
    %v131 = vld [vmem:[#allocation2 + $0x194] sm:$0xf]
    %v132 = vld [vmem:[#allocation2 + $0x198] sm:$0xf]
    %v133 = vld [vmem:[#allocation2 + $0x19c] sm:$0xf]
    %v134 = vld [vmem:[#allocation2 + $0x1a0] sm:$0xf]
    %v135 = vld [vmem:[#allocation2 + $0x1a4] sm:$0xf]
    %v136 = vld [vmem:[#allocation2 + $0x1a8] sm:$0xf]
    %v137 = vld [vmem:[#allocation2 + $0x1ac] sm:$0xf]
    %v138 = vld [vmem:[#allocation2 + $0x1b0] sm:$0xf]
    %v139 = vld [vmem:[#allocation2 + $0x1b4] sm:$0xf]
    %v140 = vld [vmem:[#allocation2 + $0x1b8] sm:$0xf]
    %v141 = vld [vmem:[#allocation2 + $0x1bc] sm:$0xf]
    %v146 = vunpack.c.l.b16 %v26
    %v147 = vunpack.c.h.b16 %v26
    %v148 = vunpack.c.l.b16 %v27
    %v149 = vunpack.c.h.b16 %v27
    %v150 = vunpack.c.l.b16 %v28
    %v151 = vunpack.c.h.b16 %v28
    %v152 = vunpack.c.l.b16 %v29
    %v153 = vpack.c.b16 %v146, %v146
    %v154 = vpack.c.b16 %v147, %v147
    %v155 = vpack.c.b16 %v148, %v148
    %v156 = vpack.c.b16 %v149, %v149
    %v157 = vpack.c.b16 %v150, %v150
    %v158 = vpack.c.b16 %v151, %v151
    %v159 = vpack.c.b16 %v152, %v152
    %v279 = vunpack.c.l.b16 %v30
    %v280 = vunpack.c.l.b16 %v31
    %v281 = vunpack.c.l.b16 %v32
    %v282 = vunpack.c.l.b16 %v33
    %v283 = vunpack.c.l.b16 %v34
    %v284 = vunpack.c.l.b16 %v35
    %v285 = vunpack.c.l.b16 %v36
    %v286 = vunpack.c.l.b16 %v37
    %v287 = vunpack.c.l.b16 %v38
    %v288 = vunpack.c.l.b16 %v39
    %v289 = vunpack.c.l.b16 %v40
    %v290 = vunpack.c.l.b16 %v41
    %v291 = vunpack.c.l.b16 %v42
    %v292 = vunpack.c.l.b16 %v43
    %v293 = vunpack.c.l.b16 %v44
    %v294 = vunpack.c.l.b16 %v45
    %v295 = vunpack.c.l.b16 %v46
    %v296 = vunpack.c.l.b16 %v47
    %v297 = vunpack.c.l.b16 %v48
    %v298 = vunpack.c.l.b16 %v49
    %v299 = vunpack.c.l.b16 %v50
    %v300 = vunpack.c.l.b16 %v51
    %v301 = vunpack.c.l.b16 %v52
    %v302 = vunpack.c.l.b16 %v53
    %v303 = vunpack.c.l.b16 %v54
    %v304 = vunpack.c.l.b16 %v55
    %v305 = vunpack.c.l.b16 %v56
    %v306 = vunpack.c.l.b16 %v57
    %v307 = vunpack.c.l.b16 %v58
    %v308 = vunpack.c.l.b16 %v59
    %v309 = vunpack.c.l.b16 %v60
    %v310 = vunpack.c.l.b16 %v61
    %v311 = vunpack.c.l.b16 %v62
    %v312 = vunpack.c.l.b16 %v63
    %v313 = vunpack.c.l.b16 %v64
    %v314 = vunpack.c.l.b16 %v65
    %v315 = vunpack.c.l.b16 %v66
    %v316 = vunpack.c.l.b16 %v67
    %v317 = vunpack.c.l.b16 %v68
    %v318 = vunpack.c.l.b16 %v69
    %v319 = vunpack.c.l.b16 %v70
    %v320 = vunpack.c.l.b16 %v71
    %v321 = vunpack.c.l.b16 %v72
    %v322 = vunpack.c.l.b16 %v73
    %v323 = vunpack.c.l.b16 %v74
    %v324 = vunpack.c.l.b16 %v75
    %v325 = vunpack.c.l.b16 %v76
    %v326 = vunpack.c.l.b16 %v77
    %v327 = vunpack.c.l.b16 %v78
    %v328 = vunpack.c.l.b16 %v79
    %v329 = vunpack.c.l.b16 %v80
    %v330 = vunpack.c.l.b16 %v81
    %v331 = vunpack.c.l.b16 %v82
    %v332 = vunpack.c.l.b16 %v83
    %v333 = vunpack.c.l.b16 %v84
    %v334 = vunpack.c.l.b16 %v85
    %v335 = vunpack.c.l.b16 %v86
    %v336 = vunpack.c.l.b16 %v87
    %v337 = vunpack.c.l.b16 %v88
    %v338 = vunpack.c.l.b16 %v89
    %v339 = vunpack.c.l.b16 %v90
    %v340 = vunpack.c.l.b16 %v91
    %v341 = vunpack.c.l.b16 %v92
    %v342 = vunpack.c.l.b16 %v93
    %v343 = vunpack.c.l.b16 %v94
    %v344 = vunpack.c.l.b16 %v95
    %v345 = vunpack.c.l.b16 %v96
    %v346 = vunpack.c.l.b16 %v97
    %v347 = vunpack.c.l.b16 %v98
    %v348 = vunpack.c.l.b16 %v99
    %v349 = vunpack.c.l.b16 %v100
    %v350 = vunpack.c.l.b16 %v101
    %v351 = vunpack.c.l.b16 %v102
    %v352 = vunpack.c.l.b16 %v103
    %v353 = vunpack.c.l.b16 %v104
    %v354 = vunpack.c.l.b16 %v105
    %v355 = vunpack.c.l.b16 %v106
    %v356 = vunpack.c.l.b16 %v107
    %v357 = vunpack.c.l.b16 %v108
    %v358 = vunpack.c.l.b16 %v109
    %v359 = vunpack.c.l.b16 %v110
    %v360 = vunpack.c.l.b16 %v111
    %v361 = vunpack.c.l.b16 %v112
    %v362 = vunpack.c.l.b16 %v113
    %v363 = vunpack.c.l.b16 %v114
    %v364 = vunpack.c.l.b16 %v115
    %v365 = vunpack.c.l.b16 %v116
    %v366 = vunpack.c.l.b16 %v117
    %v367 = vunpack.c.l.b16 %v118
    %v368 = vunpack.c.l.b16 %v119
    %v369 = vunpack.c.l.b16 %v120
    %v370 = vunpack.c.l.b16 %v121
    %v371 = vunpack.c.l.b16 %v122
    %v372 = vunpack.c.l.b16 %v123
    %v373 = vunpack.c.l.b16 %v124
    %v374 = vunpack.c.l.b16 %v125
    %v375 = vunpack.c.l.b16 %v126
    %v376 = vunpack.c.l.b16 %v127
    %v377 = vunpack.c.l.b16 %v128
    %v378 = vunpack.c.l.b16 %v129
    %v379 = vunpack.c.l.b16 %v130
    %v380 = vunpack.c.l.b16 %v131
    %v381 = vunpack.c.l.b16 %v132
    %v382 = vunpack.c.l.b16 %v133
    %v383 = vunpack.c.l.b16 %v134
    %v384 = vunpack.c.l.b16 %v135
    %v385 = vunpack.c.l.b16 %v136
    %v386 = vunpack.c.l.b16 %v137
    %v387 = vunpack.c.l.b16 %v138
    %v388 = vunpack.c.l.b16 %v139
    %v389 = vunpack.c.l.b16 %v140
    %v390 = vunpack.c.l.b16 %v141
    %v391 = vpack.c.b16 %v280, %v279
    %v392 = vpack.c.b16 %v282, %v281
    %v393 = vpack.c.b16 %v284, %v283
    %v394 = vpack.c.b16 %v286, %v285
    %v395 = vpack.c.b16 %v288, %v287
    %v396 = vpack.c.b16 %v290, %v289
    %v397 = vpack.c.b16 %v292, %v291
    %v398 = vpack.c.b16 %v294, %v293
    %v399 = vpack.c.b16 %v296, %v295
    %v400 = vpack.c.b16 %v298, %v297
    %v401 = vpack.c.b16 %v300, %v299
    %v402 = vpack.c.b16 %v302, %v301
    %v403 = vpack.c.b16 %v304, %v303
    %v404 = vpack.c.b16 %v306, %v305
    %v405 = vpack.c.b16 %v308, %v307
    %v406 = vpack.c.b16 %v310, %v309
    %v407 = vpack.c.b16 %v312, %v311
    %v408 = vpack.c.b16 %v314, %v313
    %v409 = vpack.c.b16 %v316, %v315
    %v410 = vpack.c.b16 %v318, %v317
    %v411 = vpack.c.b16 %v320, %v319
    %v412 = vpack.c.b16 %v322, %v321
    %v413 = vpack.c.b16 %v324, %v323
    %v414 = vpack.c.b16 %v326, %v325
    %v415 = vpack.c.b16 %v328, %v327
    %v416 = vpack.c.b16 %v330, %v329
    %v417 = vpack.c.b16 %v332, %v331
    %v418 = vpack.c.b16 %v334, %v333
    %v419 = vpack.c.b16 %v336, %v335
    %v420 = vpack.c.b16 %v338, %v337
    %v421 = vpack.c.b16 %v340, %v339
    %v422 = vpack.c.b16 %v342, %v341
    %v423 = vpack.c.b16 %v344, %v343
    %v424 = vpack.c.b16 %v346, %v345
    %v425 = vpack.c.b16 %v348, %v347
    %v426 = vpack.c.b16 %v350, %v349
    %v427 = vpack.c.b16 %v352, %v351
    %v428 = vpack.c.b16 %v354, %v353
    %v429 = vpack.c.b16 %v356, %v355
    %v430 = vpack.c.b16 %v358, %v357
    %v431 = vpack.c.b16 %v360, %v359
    %v432 = vpack.c.b16 %v362, %v361
    %v433 = vpack.c.b16 %v364, %v363
    %v434 = vpack.c.b16 %v366, %v365
    %v435 = vpack.c.b16 %v368, %v367
    %v436 = vpack.c.b16 %v370, %v369
    %v437 = vpack.c.b16 %v372, %v371
    %v438 = vpack.c.b16 %v374, %v373
    %v439 = vpack.c.b16 %v376, %v375
    %v440 = vpack.c.b16 %v378, %v377
    %v441 = vpack.c.b16 %v380, %v379
    %v442 = vpack.c.b16 %v382, %v381
    %v443 = vpack.c.b16 %v384, %v383
    %v444 = vpack.c.b16 %v386, %v385
    %v445 = vpack.c.b16 %v388, %v387
    %v446 = vpack.c.b16 %v390, %v389
    %503 = vmatprep.subr.bf16.mxu0 0
    %504 = vmatpush1.bf16.msra.mxu0 %v398
    %505 = vmatprep.subr.bf16.mxu0 0
    %506 = vmatpush1.bf16.msra.mxu0 %v397
    %507 = vmatprep.subr.bf16.mxu0 0
    %508 = vmatpush1.bf16.msra.mxu0 %v396
    %509 = vmatprep.subr.bf16.mxu0 0
    %510 = vmatpush1.bf16.msra.mxu0 %v395
    %511 = vmatprep.subr.bf16.mxu0 0
    %512 = vmatpush1.bf16.msra.mxu0 %v394
    %513 = vmatprep.subr.bf16.mxu0 0
    %514 = vmatpush1.bf16.msra.mxu0 %v393
    %515 = vmatprep.subr.bf16.mxu0 0
    %516 = vmatpush1.bf16.msra.mxu0 %v392
    %517 = vmatprep.subr.bf16.mxu0 0
    %518 = vmatpush1.bf16.msra.mxu0 %v391
    %519 = vmatprep.subr.bf16.mxu0 0
    %520 = vmatpush2.bf16.msra.mxu0 %v406
    %521 = vmatprep.subr.bf16.mxu0 0
    %522 = vmatpush2.bf16.msra.mxu0 %v405
    %523 = vmatprep.subr.bf16.mxu0 0
    %524 = vmatpush2.bf16.msra.mxu0 %v404
    %525 = vmatprep.subr.bf16.mxu0 0
    %526 = vmatpush2.bf16.msra.mxu0 %v403
    %527 = vmatprep.subr.bf16.mxu0 0
    %528 = vmatpush2.bf16.msra.mxu0 %v402
    %529 = vmatprep.subr.bf16.mxu0 0
    %530 = vmatpush2.bf16.msra.mxu0 %v401
    %531 = vmatprep.subr.bf16.mxu0 0
    %532 = vmatpush2.bf16.msra.mxu0 %v400
    %533 = vmatprep.subr.bf16.mxu0 0
    %534 = vmatpush2.bf16.msra.mxu0 %v399
    %535 = vmatprep.mubr.bf16.mxu0 %v154
    %536 = vmatmul.mubr.bf16.gmra.mxu0 %v153
    %v537 = vpop.f32.mrf.mxu0
    %v538 = vadd.f32 0.0, %v537
    %v539 = vpop.f32.mrf.mxu0
    %v540 = vpop.f32.mrf.mxu0
    %v541 = vpop.f32.mrf.mxu0
    %542 = vdwg.mxu0
    %543 = vmatprep.subr.bf16.mxu0 0
    %544 = vmatpush1.bf16.msra.mxu0 %v414
    %545 = vmatprep.subr.bf16.mxu0 0
    %546 = vmatpush1.bf16.msra.mxu0 %v413
    %547 = vmatprep.subr.bf16.mxu0 0
    %548 = vmatpush1.bf16.msra.mxu0 %v412
    %549 = vmatprep.subr.bf16.mxu0 0
    %550 = vmatpush1.bf16.msra.mxu0 %v411
    %551 = vmatprep.subr.bf16.mxu0 0
    %552 = vmatpush1.bf16.msra.mxu0 %v410
    %553 = vmatprep.subr.bf16.mxu0 0
    %554 = vmatpush1.bf16.msra.mxu0 %v409
    %555 = vmatprep.subr.bf16.mxu0 0
    %556 = vmatpush1.bf16.msra.mxu0 %v408
    %557 = vmatprep.subr.bf16.mxu0 0
    %558 = vmatpush1.bf16.msra.mxu0 %v407
    %559 = vmatprep.subr.bf16.mxu0 0
    %560 = vmatpush2.bf16.msra.mxu0 %v422
    %561 = vmatprep.subr.bf16.mxu0 0
    %562 = vmatpush2.bf16.msra.mxu0 %v421
    %563 = vmatprep.subr.bf16.mxu0 0
    %564 = vmatpush2.bf16.msra.mxu0 %v420
    %565 = vmatprep.subr.bf16.mxu0 0
    %566 = vmatpush2.bf16.msra.mxu0 %v419
    %567 = vmatprep.subr.bf16.mxu0 0
    %568 = vmatpush2.bf16.msra.mxu0 %v418
    %569 = vmatprep.subr.bf16.mxu0 0
    %570 = vmatpush2.bf16.msra.mxu0 %v417
    %571 = vmatprep.subr.bf16.mxu0 0
    %572 = vmatpush2.bf16.msra.mxu0 %v416
    %573 = vmatprep.subr.bf16.mxu0 0
    %574 = vmatpush2.bf16.msra.mxu0 %v415
    %575 = vmatprep.mubr.bf16.mxu0 %v156
    %576 = vmatmul.mubr.bf16.gmra.mxu0 %v155
    %v577 = vpop.f32.mrf.mxu0
    %v578 = vadd.f32 %v538, %v577
    %v579 = vpop.f32.mrf.mxu0
    %v580 = vpop.f32.mrf.mxu0
    %v581 = vpop.f32.mrf.mxu0
    %582 = vdwg.mxu0
    %583 = vmatprep.subr.bf16.mxu0 0
    %584 = vmatpush1.bf16.msra.mxu0 %v430
    %585 = vmatprep.subr.bf16.mxu0 0
    %586 = vmatpush1.bf16.msra.mxu0 %v429
    %587 = vmatprep.subr.bf16.mxu0 0
    %588 = vmatpush1.bf16.msra.mxu0 %v428
    %589 = vmatprep.subr.bf16.mxu0 0
    %590 = vmatpush1.bf16.msra.mxu0 %v427
    %591 = vmatprep.subr.bf16.mxu0 0
    %592 = vmatpush1.bf16.msra.mxu0 %v426
    %593 = vmatprep.subr.bf16.mxu0 0
    %594 = vmatpush1.bf16.msra.mxu0 %v425
    %595 = vmatprep.subr.bf16.mxu0 0
    %596 = vmatpush1.bf16.msra.mxu0 %v424
    %597 = vmatprep.subr.bf16.mxu0 0
    %598 = vmatpush1.bf16.msra.mxu0 %v423
    %599 = vmatprep.subr.bf16.mxu0 0
    %600 = vmatpush2.bf16.msra.mxu0 %v438
    %601 = vmatprep.subr.bf16.mxu0 0
    %602 = vmatpush2.bf16.msra.mxu0 %v437
    %603 = vmatprep.subr.bf16.mxu0 0
    %604 = vmatpush2.bf16.msra.mxu0 %v436
    %605 = vmatprep.subr.bf16.mxu0 0
    %606 = vmatpush2.bf16.msra.mxu0 %v435
    %607 = vmatprep.subr.bf16.mxu0 0
    %608 = vmatpush2.bf16.msra.mxu0 %v434
    %609 = vmatprep.subr.bf16.mxu0 0
    %610 = vmatpush2.bf16.msra.mxu0 %v433
    %611 = vmatprep.subr.bf16.mxu0 0
    %612 = vmatpush2.bf16.msra.mxu0 %v432
    %613 = vmatprep.subr.bf16.mxu0 0
    %614 = vmatpush2.bf16.msra.mxu0 %v431
    %615 = vmatprep.mubr.bf16.mxu0 %v158
    %616 = vmatmul.mubr.bf16.gmra.mxu0 %v157
    %v617 = vpop.f32.mrf.mxu0
    %v618 = vadd.f32 %v578, %v617
    %v619 = vpop.f32.mrf.mxu0
    %v620 = vpop.f32.mrf.mxu0
    %v621 = vpop.f32.mrf.mxu0
    %622 = vdwg.mxu0
    %623 = vmatprep.subr.bf16.mxu0 0
    %624 = vmatpush1.bf16.msra.mxu0 %v446
    %625 = vmatprep.subr.bf16.mxu0 0
    %626 = vmatpush1.bf16.msra.mxu0 %v445
    %627 = vmatprep.subr.bf16.mxu0 0
    %628 = vmatpush1.bf16.msra.mxu0 %v444
    %629 = vmatprep.subr.bf16.mxu0 0
    %630 = vmatpush1.bf16.msra.mxu0 %v443
    %631 = vmatprep.subr.bf16.mxu0 0
    %632 = vmatpush1.bf16.msra.mxu0 %v442
    %633 = vmatprep.subr.bf16.mxu0 0
    %634 = vmatpush1.bf16.msra.mxu0 %v441
    %635 = vmatprep.subr.bf16.mxu0 0
    %636 = vmatpush1.bf16.msra.mxu0 %v440
    %637 = vmatprep.subr.bf16.mxu0 0
    %638 = vmatpush1.bf16.msra.mxu0 %v439
    %639 = vmatprep.subr.bf16.mxu0 0
    %640 = vmatpush2.bf16.msra.mxu0 0
    %641 = vmatprep.subr.bf16.mxu0 0
    %642 = vmatpush2.bf16.msra.mxu0 0
    %643 = vmatprep.subr.bf16.mxu0 0
    %644 = vmatpush2.bf16.msra.mxu0 0
    %645 = vmatprep.subr.bf16.mxu0 0
    %646 = vmatpush2.bf16.msra.mxu0 0
    %647 = vmatprep.subr.bf16.mxu0 0
    %648 = vmatpush2.bf16.msra.mxu0 0
    %649 = vmatprep.subr.bf16.mxu0 0
    %650 = vmatpush2.bf16.msra.mxu0 0
    %651 = vmatprep.subr.bf16.mxu0 0
    %652 = vmatpush2.bf16.msra.mxu0 0
    %653 = vmatprep.subr.bf16.mxu0 0
    %654 = vmatpush2.bf16.msra.mxu0 0
    %655 = vmatprep.mubr.bf16.mxu0 0
    %656 = vmatmul.mubr.bf16.gmra.mxu0 %v159
    %v657 = vpop.f32.mrf.mxu0
    %v658 = vadd.f32 %v618, %v657
    %v659 = vpop.f32.mrf.mxu0
    %v660 = vpop.f32.mrf.mxu0
    %v661 = vpop.f32.mrf.mxu0
    %662 = vdwg.mxu0
    %vm663 = vcmp.gt.f32.partialorder %v658, 0.0
    %v664 = vmul.f32 %v658, 1.442695
    %v665 = vpow.pop %v664
    %v666 = vsub.f32 %v665, 1.0
    %v667 = vmul.f32 %v666, 1.6732632
    %v668 = vsel %vm663, %v658, %v667
    %v669 = vmul.f32 %v668, 1.050701
    %v670 = vld [vmem:[#allocation2 + $0x1c0] sm:$0xf]
    %v671 = vld [vmem:[#allocation2 + $0x1c4] sm:$0xf]
    %v672 = vld [vmem:[#allocation2 + $0x1c8] sm:$0xf]
    %v673 = vld [vmem:[#allocation2 + $0x1cc] sm:$0xf]
    %v674 = vld [vmem:[#allocation2 + $0x1d0] sm:$0xf]
    %v675 = vld [vmem:[#allocation2 + $0x1d4] sm:$0xf]
    %v676 = vld [vmem:[#allocation2 + $0x1d8] sm:$0xf]
    %v677 = vld [vmem:[#allocation2 + $0x1dc] sm:$0xf]
    %v678 = vld [vmem:[#allocation2 + $0x1e0] sm:$0xf]
    %v679 = vld [vmem:[#allocation2 + $0x1e4] sm:$0xf]
    %v680 = vld [vmem:[#allocation2 + $0x1e8] sm:$0xf]
    %v681 = vld [vmem:[#allocation2 + $0x1ec] sm:$0xf]
    %v682 = vld [vmem:[#allocation2 + $0x1f0] sm:$0xf]
    %v683 = vld [vmem:[#allocation2 + $0x1f4] sm:$0xf]
    %v684 = vld [vmem:[#allocation2 + $0x1f8] sm:$0xf]
    %v685 = vld [vmem:[#allocation2 + $0x1fc] sm:$0xf]
    %v686 = vunpack.c.l.bf16 %v670
    %v687 = vunpack.c.l.bf16 %v671
    %v688 = vunpack.c.l.bf16 %v672
    %v689 = vunpack.c.l.bf16 %v673
    %v690 = vunpack.c.l.bf16 %v674
    %v691 = vunpack.c.l.bf16 %v675
    %v692 = vunpack.c.l.bf16 %v676
    %v693 = vunpack.c.l.bf16 %v677
    %v694 = vunpack.c.l.bf16 %v678
    %v695 = vunpack.c.l.bf16 %v679
    %v696 = vunpack.c.l.bf16 %v680
    %v697 = vunpack.c.l.bf16 %v681
    %v698 = vunpack.c.l.bf16 %v682
    %v699 = vunpack.c.l.bf16 %v683
    %v700 = vunpack.c.l.bf16 %v684
    %v701 = vunpack.c.l.bf16 %v685
    %v702 = vld [vmem:[#allocation2 + $0x240] sm:$0x1]
    %v703 = vunpack.c.l.bf16 %v702
    %v704 = vlaneseq
    %v705 = vshrl.u32 %v704, 7
    %v706 = vsub.s32 0, %v705
    %v707 = vrot.slane %v703, %v706
    %708 = vmatprep.subr.mxu0 0.0
    %709 = vmatpush1.msra.mxu0 %v701
    %710 = vmatprep.subr.mxu0 0.0
    %711 = vmatpush1.msra.mxu0 %v700
    %712 = vmatprep.subr.mxu0 0.0
    %713 = vmatpush1.msra.mxu0 %v699
    %714 = vmatprep.subr.mxu0 0.0
    %715 = vmatpush1.msra.mxu0 %v698
    %716 = vmatprep.subr.mxu0 0.0
    %717 = vmatpush1.msra.mxu0 %v697
    %718 = vmatprep.subr.mxu0 0.0
    %719 = vmatpush1.msra.mxu0 %v696
    %720 = vmatprep.subr.mxu0 0.0
    %721 = vmatpush1.msra.mxu0 %v695
    %722 = vmatprep.subr.mxu0 0.0
    %723 = vmatpush1.msra.mxu0 %v694
    %724 = vmatprep.subr.mxu0 0.0
    %725 = vmatpush1.msra.mxu0 %v693
    %726 = vmatprep.subr.mxu0 0.0
    %727 = vmatpush1.msra.mxu0 %v692
    %728 = vmatprep.subr.mxu0 0.0
    %729 = vmatpush1.msra.mxu0 %v691
    %730 = vmatprep.subr.mxu0 0.0
    %731 = vmatpush1.msra.mxu0 %v690
    %732 = vmatprep.subr.mxu0 0.0
    %733 = vmatpush1.msra.mxu0 %v689
    %734 = vmatprep.subr.mxu0 0.0
    %735 = vmatpush1.msra.mxu0 %v688
    %736 = vmatprep.subr.mxu0 0.0
    %737 = vmatpush1.msra.mxu0 %v687
    %738 = vmatprep.subr.mxu0 0.0
    %739 = vmatpush1.msra.mxu0 %v686
    %740 = vmatprep.subr.mxu0 0.0
    %741 = vmatpush2.msra.mxu0 0.0
    %742 = vmatprep.subr.mxu0 0.0
    %743 = vmatpush2.msra.mxu0 0.0
    %744 = vmatprep.subr.mxu0 0.0
    %745 = vmatpush2.msra.mxu0 0.0
    %746 = vmatprep.subr.mxu0 0.0
    %747 = vmatpush2.msra.mxu0 0.0
    %748 = vmatprep.subr.mxu0 0.0
    %749 = vmatpush2.msra.mxu0 0.0
    %750 = vmatprep.subr.mxu0 0.0
    %751 = vmatpush2.msra.mxu0 0.0
    %752 = vmatprep.subr.mxu0 0.0
    %753 = vmatpush2.msra.mxu0 0.0
    %754 = vmatprep.subr.mxu0 0.0
    %755 = vmatpush2.msra.mxu0 0.0
    %756 = vmatprep.subr.mxu0 0.0
    %757 = vmatpush2.msra.mxu0 0.0
    %758 = vmatprep.subr.mxu0 0.0
    %759 = vmatpush2.msra.mxu0 0.0
    %760 = vmatprep.subr.mxu0 0.0
    %761 = vmatpush2.msra.mxu0 0.0
    %762 = vmatprep.subr.mxu0 0.0
    %763 = vmatpush2.msra.mxu0 0.0
    %764 = vmatprep.subr.mxu0 0.0
    %765 = vmatpush2.msra.mxu0 0.0
    %766 = vmatprep.subr.mxu0 0.0
    %767 = vmatpush2.msra.mxu0 0.0
    %768 = vmatprep.subr.mxu0 0.0
    %769 = vmatpush2.msra.mxu0 0.0
    %770 = vmatprep.subr.mxu0 0.0
    %771 = vmatpush2.msra.mxu0 0.0
    %772 = vmatprep.mubr.f32.mxu0 0.0
    %773 = vmatmul.mubr.f32.gmra.mxu0 %v669
    %v774 = vpop.f32.mrf.mxu0
    %v775 = vadd.f32 %v707, %v774
    %v776 = vpop.f32.mrf.mxu0
    %777 = vdwg.mxu0
    %vm778 = vcmp.gt.f32.partialorder %v775, 0.0
    %v779 = vmul.f32 %v775, 1.442695
    %v780 = vpow.pop %v779
    %v781 = vsub.f32 %v780, 1.0
    %v782 = vmul.f32 %v781, 1.6732632
    %v783 = vsel %vm778, %v775, %v782
    %v784 = vmul.f32 %v783, 1.050701
    %v785 = vld [vmem:[#allocation2 + $0x200] sm:$0xf]
    %v786 = vld [vmem:[#allocation2 + $0x204] sm:$0xf]
    %v787 = vld [vmem:[#allocation2 + $0x208] sm:$0xf]
    %v788 = vld [vmem:[#allocation2 + $0x20c] sm:$0xf]
    %v789 = vld [vmem:[#allocation2 + $0x210] sm:$0xf]
    %v790 = vld [vmem:[#allocation2 + $0x214] sm:$0xf]
    %v791 = vld [vmem:[#allocation2 + $0x218] sm:$0xf]
    %v792 = vld [vmem:[#allocation2 + $0x21c] sm:$0xf]
    %v793 = vld [vmem:[#allocation2 + $0x220] sm:$0xf]
    %v794 = vld [vmem:[#allocation2 + $0x224] sm:$0xf]
    %v795 = vld [vmem:[#allocation2 + $0x228] sm:$0xf]
    %v796 = vld [vmem:[#allocation2 + $0x22c] sm:$0xf]
    %v797 = vld [vmem:[#allocation2 + $0x230] sm:$0xf]
    %v798 = vld [vmem:[#allocation2 + $0x234] sm:$0xf]
    %v799 = vld [vmem:[#allocation2 + $0x238] sm:$0xf]
    %v800 = vld [vmem:[#allocation2 + $0x23c] sm:$0xf]
    %v801 = vunpack.c.l.bf16 %v785
    %v802 = vunpack.c.l.bf16 %v786
    %v803 = vunpack.c.l.bf16 %v787
    %v804 = vunpack.c.l.bf16 %v788
    %v805 = vunpack.c.l.bf16 %v789
    %v806 = vunpack.c.l.bf16 %v790
    %v807 = vunpack.c.l.bf16 %v791
    %v808 = vunpack.c.l.bf16 %v792
    %v809 = vunpack.c.l.bf16 %v793
    %v810 = vunpack.c.l.bf16 %v794
    %v811 = vunpack.c.l.bf16 %v795
    %v812 = vunpack.c.l.bf16 %v796
    %v813 = vunpack.c.l.bf16 %v797
    %v814 = vunpack.c.l.bf16 %v798
    %v815 = vunpack.c.l.bf16 %v799
    %v816 = vunpack.c.l.bf16 %v800
    %817 = vmatprep.subr.mxu0 0.0
    %818 = vmatpush1.msra.mxu0 %v816
    %819 = vmatprep.subr.mxu0 0.0
    %820 = vmatpush1.msra.mxu0 %v815
    %821 = vmatprep.subr.mxu0 0.0
    %822 = vmatpush1.msra.mxu0 %v814
    %823 = vmatprep.subr.mxu0 0.0
    %824 = vmatpush1.msra.mxu0 %v813
    %825 = vmatprep.subr.mxu0 0.0
    %826 = vmatpush1.msra.mxu0 %v812
    %827 = vmatprep.subr.mxu0 0.0
    %828 = vmatpush1.msra.mxu0 %v811
    %829 = vmatprep.subr.mxu0 0.0
    %830 = vmatpush1.msra.mxu0 %v810
    %831 = vmatprep.subr.mxu0 0.0
    %832 = vmatpush1.msra.mxu0 %v809
    %833 = vmatprep.subr.mxu0 0.0
    %834 = vmatpush1.msra.mxu0 %v808
    %835 = vmatprep.subr.mxu0 0.0
    %836 = vmatpush1.msra.mxu0 %v807
    %837 = vmatprep.subr.mxu0 0.0
    %838 = vmatpush1.msra.mxu0 %v806
    %839 = vmatprep.subr.mxu0 0.0
    %840 = vmatpush1.msra.mxu0 %v805
    %841 = vmatprep.subr.mxu0 0.0
    %842 = vmatpush1.msra.mxu0 %v804
    %843 = vmatprep.subr.mxu0 0.0
    %844 = vmatpush1.msra.mxu0 %v803
    %845 = vmatprep.subr.mxu0 0.0
    %846 = vmatpush1.msra.mxu0 %v802
    %847 = vmatprep.subr.mxu0 0.0
    %848 = vmatpush1.msra.mxu0 %v801
    %849 = vmatprep.subr.mxu0 0.0
    %850 = vmatpush2.msra.mxu0 0.0
    %851 = vmatprep.subr.mxu0 0.0
    %852 = vmatpush2.msra.mxu0 0.0
    %853 = vmatprep.subr.mxu0 0.0
    %854 = vmatpush2.msra.mxu0 0.0
    %855 = vmatprep.subr.mxu0 0.0
    %856 = vmatpush2.msra.mxu0 0.0
    %857 = vmatprep.subr.mxu0 0.0
    %858 = vmatpush2.msra.mxu0 0.0
    %859 = vmatprep.subr.mxu0 0.0
    %860 = vmatpush2.msra.mxu0 0.0
    %861 = vmatprep.subr.mxu0 0.0
    %862 = vmatpush2.msra.mxu0 0.0
    %863 = vmatprep.subr.mxu0 0.0
    %864 = vmatpush2.msra.mxu0 0.0
    %865 = vmatprep.subr.mxu0 0.0
    %866 = vmatpush2.msra.mxu0 0.0
    %867 = vmatprep.subr.mxu0 0.0
    %868 = vmatpush2.msra.mxu0 0.0
    %869 = vmatprep.subr.mxu0 0.0
    %870 = vmatpush2.msra.mxu0 0.0
    %871 = vmatprep.subr.mxu0 0.0
    %872 = vmatpush2.msra.mxu0 0.0
    %873 = vmatprep.subr.mxu0 0.0
    %874 = vmatpush2.msra.mxu0 0.0
    %875 = vmatprep.subr.mxu0 0.0
    %876 = vmatpush2.msra.mxu0 0.0
    %877 = vmatprep.subr.mxu0 0.0
    %878 = vmatpush2.msra.mxu0 0.0
    %879 = vmatprep.subr.mxu0 0.0
    %880 = vmatpush2.msra.mxu0 0.0
    %881 = vmatprep.mubr.f32.mxu0 0.0
    %882 = vmatmul.mubr.f32.gmra.mxu0 %v784
    %v883 = vpop.f32.mrf.mxu0
    %v884 = vadd.f32 0.0, %v883
    %v885 = vpop.f32.mrf.mxu0
    %886 = vdwg.mxu0
    %v887 = vlaneseq
    %v888 = vand.u32 %v887, 127
    %vm889 = vcmp.lt.s32.totalorder %v888, 10
    %v890 = vsel %vm889, %v884, -1e+30
    %891 = vmax.xlane.f32.xlu0 %v890
    %v892 = vpop.xlane.xlu0 %891
    %v893 = vsub.f32 %v890, %v892
    %v894 = vmul.f32 %v893, 1.442695
    %v895 = vpow.pop %v894
    %v896 = vsel %vm889, %v895, 0.0
    %897 = vadd.xlane.f32.xlu0 %v896
    %v898 = vpop.xlane.xlu0 %897
    %v899 = vlog2.pop %v898
    %v900 = vmul.f32 %v899, 0.6931472
    %v901 = vadd.f32 %v892, %v900
    %v902 = vsub.f32 %v884, %v901
    %v903 = vsel %vm889, %v902, 0.0
    %904 = vst [vmem:[%s2] sm:$0xff] %v903
    // Predicated region
    $region14: #{conv3d_then_linear.1} parent=1 // pred_check
      _
    $region15: #{conv3d_then_linear.1} parent=1 // pred_check_branch
      %906 = sbr.rel (0) target = $region17
    $region16: #{conv3d_then_linear.1} parent=1 // pred_region
      _
    $region17: #{conv3d_then_linear.1} parent=1 // pred_fallthru
      _
    // Predicated region
    $region18: #{conv3d_then_linear.1} parent=1 // pred_check
      _
    $region19: #{conv3d_then_linear.1} parent=1 // pred_check_branch
      %908 = sbr.rel (0) target = $region21
    $region20: #{conv3d_then_linear.1} parent=1 // pred_region
      _
    $region21: #{conv3d_then_linear.1} parent=1 // pred_fallthru
      _
    %909 = vsyncpa [#allocation3], 1

</llo_original>
